<compile_context>
chip_gen: v7x
topology: tpu7x:2x2x1
jax: 0.10.0
libtpu: 0.0.40
codegen_flags: <defaults>
</compile_context>

<pallas_src>
import functools
import math

import jax
import jax.numpy as jnp
from jax.experimental import pallas as pl
from jax.experimental.pallas import tpu as pltpu


def _conv_silu_kernel(x_ref, w_ref, b_ref, o_ref, *, shifts, m):
    """One grid step processes B images.

    x_ref: (B, Cin, L_pad)   zero-padded, row-pitch-flattened images
    w_ref: (Cout, T*Cin)     3x3 taps folded into the contraction axis
    b_ref: (Cout, 1)         bias (broadcast over lanes)
    o_ref: (B, Cout, M)      lane-dense output, M = H * row_pitch
    """
    w = w_ref[...]                               # (Cout, T*Cin)
    bias = b_ref[...]                            # (Cout, 1)
    batch = x_ref.shape[0]
    for b in range(batch):                       # static, unrolled
        x = x_ref[b]                             # (Cin, L_pad)
        # Stack the 9 shifted views along the contraction axis -> (T*Cin, M).
        # Static lane-offset slices lower to XLU lane rotates (cheap, and the
        # XLU slot is otherwise idle here).
        x9 = jnp.concatenate([x[:, s:s + m] for s in shifts], axis=0)
        acc = jnp.dot(w, x9, preferred_element_type=jnp.float32)    # (Cout, M)
        acc = acc + bias
        # SiLU(x) = x * sigmoid(x), exact sigmoid via tanh (1 EUP op/elem).
        sig = 0.5 * jnp.tanh(0.5 * acc) + 0.5
        o_ref[b] = (acc * sig).astype(o_ref.dtype)


def conv_silu(x_nchw, weight, bias, *, kernel_size=3, padding=1):
    """Conv2d(kernel_size, padding=1) + SiLU, matching PyTorch ConvSilu."""
    N, Cin, H, W = x_nchw.shape
    Cout = weight.shape[0]
    KH = KW = kernel_size
    T = KH * KW
    elt = jnp.dtype(x_nchw.dtype).itemsize

    # ---- row-pitch flat layout of the zero-padded image -------------------
    # Round the pitch up so M = H*Wr is a multiple of 128 (no masked-store
    # tail on the output vregs), but only if the blow-up is modest.
    Wr_min = W + 2 * padding
    step = 128 // math.gcd(H, 128)
    Wr = ((Wr_min + step - 1) // step) * step
    if Wr > 2 * Wr_min:
        Wr = Wr_min                              # accept masked tail instead
    Hp = H + 2 * padding
    M = H * Wr                                   # lane-dense outputs / (n,cout)
    shifts = tuple(kh * Wr + kw for kh in range(KH) for kw in range(KW))
    L_need = M + shifts[-1]
    L_pad = max(L_need, Hp * Wr)
    L_pad = ((L_pad + 127) // 128) * 128

    # ---- glue (plain JAX, ~1x input bytes; no im2col blow-up) -------------
    x_pad = jnp.pad(
        x_nchw,
        ((0, 0), (0, 0), (padding, padding), (padding, Wr - W - padding)))
    x_flat = x_pad.reshape(N, Cin, Hp * Wr)
    x_flat = jnp.pad(x_flat, ((0, 0), (0, 0), (0, L_pad - Hp * Wr)))

    # PyTorch weight (Cout, Cin, KH, KW) -> (Cout, KH, KW, Cin) -> (Cout, T*Cin)
    # Column index t*Cin + cin matches the tap/channel order of x9 in-kernel.
    w2 = jnp.transpose(weight, (0, 2, 3, 1)).reshape(Cout, T * Cin)
    b2d = bias.reshape(Cout, 1)

    # ---- batch blocking -----------------------------------------------------
    per_image_bytes = (Cin * L_pad + Cout * M) * elt
    target_step_bytes = 512 << 10
    B = max(1, min(N, target_step_bytes // max(per_image_bytes, 1)))
    N_pad = ((N + B - 1) // B) * B
    if N_pad != N:
        x_flat = jnp.pad(x_flat, ((0, N_pad - N), (0, 0), (0, 0)))
    grid = (N_pad // B,)

    # ---- VMEM budget (generation-aware) ------------------------------------
    try:
        info = pltpu.get_tpu_info()
        vmem_cap = int(getattr(info, "vmem_capacity_bytes", 64 << 20))
    except Exception:
        vmem_cap = 64 << 20                       # conservative (v7x-sized)
    block_bytes = B * per_image_bytes             # per-step in + out
    fixed_bytes = (T * Cout * Cin + Cout) * elt   # weights + bias
    vmem_limit = int(min(int(vmem_cap * 0.75),
                         max(16 << 20, 4 * block_bytes + fixed_bytes + (2 << 20))))

    flops = 2 * N_pad * Cout * M * (T * Cin) + 4 * N_pad * Cout * M
    bytes_accessed = elt * (x_flat.size + w2.size + b2d.size + N_pad * Cout * M)

    kernel = functools.partial(_conv_silu_kernel, shifts=shifts, m=M)

    out = pl.pallas_call(
        kernel,
        out_shape=jax.ShapeDtypeStruct((N_pad, Cout, M), x_nchw.dtype),
        grid_spec=pltpu.PrefetchScalarGridSpec(
            num_scalar_prefetch=0,
            grid=grid,
            in_specs=[
                pl.BlockSpec((B, Cin, L_pad), lambda n: (n, 0, 0)),
                pl.BlockSpec((Cout, T * Cin), lambda n: (0, 0)),
                pl.BlockSpec((Cout, 1), lambda n: (0, 0)),
            ],
            out_specs=pl.BlockSpec((B, Cout, M), lambda n: (n, 0, 0)),
        ),
        compiler_params=pltpu.CompilerParams(
            dimension_semantics=("parallel",),
            vmem_limit_bytes=vmem_limit,
        ),
        cost_estimate=pl.CostEstimate(
            flops=flops,
            transcendentals=N_pad * Cout * M,
            bytes_accessed=bytes_accessed,
        ),
    )(x_flat, w2, b2d)

    # (N_pad, Cout, H*Wr) -> (N, Cout, H, Wr) -> crop pitch columns -> NCHW.
    return out[:N].reshape(N, Cout, H, Wr)[:, :, :, :W]


if __name__ == "__main__":
    # ConvSilu(in_channels=4, out_channels=8, kernel_size=3)
    N, Cin, H, W = 2, 4, 16, 16
    Cout, KS = 8, 3

    key = jax.random.PRNGKey(0)
    kx, kw, kb = jax.random.split(key, 3)
    x = jax.random.normal(kx, (N, Cin, H, W), dtype=jnp.float32)
    weight = jax.random.normal(kw, (Cout, Cin, KS, KS), dtype=jnp.float32) * 0.1
    bias = jax.random.normal(kb, (Cout,), dtype=jnp.float32) * 0.1

    y = conv_silu(x, weight, bias, kernel_size=KS, padding=1)
    jax.block_until_ready(y)

    # reference check (plain JAX conv + SiLU)
    ref = jax.lax.conv_general_dilated(
        x, weight, window_strides=(1, 1), padding=((1, 1), (1, 1)),
        dimension_numbers=("NCHW", "OIHW", "NCHW"),
        precision=jax.lax.Precision.HIGHEST)
    ref = ref + bias.reshape(1, Cout, 1, 1)
    ref = ref * jax.nn.sigmoid(ref)

    assert y.shape == (N, Cout, H, W)
    # Exact-sigmoid epilogue: tolerance only needs to cover f32 matmul rounding;
    # structural errors (wrong tap/offset/weight ordering) would be O(0.1-1).
    assert jnp.allclose(y, ref, atol=1e-3, rtol=1e-3), \
        float(jnp.max(jnp.abs(y - ref)))
    print("KERNEL_OK")
</pallas_src>

<mosaic_0001>
module attributes {stable_mosaic.version = 11 : i64} {
  func.func @_conv_silu_kernel(%arg0: i32, %arg1: memref<2x4x512xf32, #tpu.memory_space<vmem>>, %arg2: memref<8x36xf32, #tpu.memory_space<vmem>>, %arg3: memref<8x1xf32, #tpu.memory_space<vmem>>, %arg4: memref<2x8x384xf32, #tpu.memory_space<vmem>>) attributes {dimension_semantics = [#tpu.dimension_semantics<parallel>], iteration_bounds = array<i64: 1>, scalar_prefetch = 0 : i64, scratch_operands = 0 : i64, tpu.core_type = #tpu.core_type<tc>, window_params = [{transform_indices = @transform_0, window_bounds = array<i64: 2, 4, 512>}, {pipeline_mode = #tpu.pipeline_mode<synchronous>, transform_indices = @transform_1, window_bounds = array<i64: 8, 36>}, {pipeline_mode = #tpu.pipeline_mode<synchronous>, transform_indices = @transform_2, window_bounds = array<i64: 8, 1>}, {transform_indices = @transform_3, window_bounds = array<i64: 2, 8, 384>}]} {
    %c0 = arith.constant 0 : index
    %c0_0 = arith.constant 0 : index
    %0 = vector.load %arg2[%c0, %c0_0] : memref<8x36xf32, #tpu.memory_space<vmem>>, vector<8x36xf32>
    %c0_1 = arith.constant 0 : index
    %c0_2 = arith.constant 0 : index
    %1 = vector.load %arg3[%c0_1, %c0_2] : memref<8x1xf32, #tpu.memory_space<vmem>>, vector<8x1xf32>
    %c0_3 = arith.constant 0 : index
    %c0_4 = arith.constant 0 : index
    %c0_5 = arith.constant 0 : index
    %2 = vector.load %arg1[%c0_3, %c0_4, %c0_5] : memref<2x4x512xf32, #tpu.memory_space<vmem>>, vector<1x4x512xf32>
    %3 = vector.shape_cast %2 : vector<1x4x512xf32> to vector<4x512xf32>
    %4 = vector.extract_strided_slice %3 {offsets = [0, 0], sizes = [4, 384], strides = [1, 1]} : vector<4x512xf32> to vector<4x384xf32>
    %5 = vector.extract_strided_slice %3 {offsets = [0, 1], sizes = [4, 384], strides = [1, 1]} : vector<4x512xf32> to vector<4x384xf32>
    %6 = vector.extract_strided_slice %3 {offsets = [0, 2], sizes = [4, 384], strides = [1, 1]} : vector<4x512xf32> to vector<4x384xf32>
    %7 = vector.extract_strided_slice %3 {offsets = [0, 24], sizes = [4, 384], strides = [1, 1]} : vector<4x512xf32> to vector<4x384xf32>
    %8 = vector.extract_strided_slice %3 {offsets = [0, 25], sizes = [4, 384], strides = [1, 1]} : vector<4x512xf32> to vector<4x384xf32>
    %9 = vector.extract_strided_slice %3 {offsets = [0, 26], sizes = [4, 384], strides = [1, 1]} : vector<4x512xf32> to vector<4x384xf32>
    %10 = vector.extract_strided_slice %3 {offsets = [0, 48], sizes = [4, 384], strides = [1, 1]} : vector<4x512xf32> to vector<4x384xf32>
    %11 = vector.extract_strided_slice %3 {offsets = [0, 49], sizes = [4, 384], strides = [1, 1]} : vector<4x512xf32> to vector<4x384xf32>
    %12 = vector.extract_strided_slice %3 {offsets = [0, 50], sizes = [4, 384], strides = [1, 1]} : vector<4x512xf32> to vector<4x384xf32>
    %13 = tpu.concatenate %4, %5, %6, %7, %8, %9, %10, %11, %12 in 0 : vector<4x384xf32>, vector<4x384xf32>, vector<4x384xf32>, vector<4x384xf32>, vector<4x384xf32>, vector<4x384xf32>, vector<4x384xf32>, vector<4x384xf32>, vector<4x384xf32> -> vector<36x384xf32>
    %cst = arith.constant dense<0.000000e+00> : vector<8x384xf32>
    %14 = tpu.matmul %0, %13, %cst {dimension_numbers = #tpu.dot_dimension_numbers<[1], [0], [0], [1], [0, 0, 1, 1], [], []>} : vector<8x36xf32>, vector<36x384xf32>, vector<8x384xf32> -> vector<8x384xf32>
    %15 = vector.broadcast %1 : vector<8x1xf32> to vector<8x384xf32>
    %16 = arith.addf %14, %15 : vector<8x384xf32>
    %cst_6 = arith.constant 5.000000e-01 : f32
    %17 = vector.broadcast %cst_6 : f32 to vector<8x384xf32>
    %18 = arith.mulf %17, %16 : vector<8x384xf32>
    %19 = math.tanh %18 : vector<8x384xf32>
    %cst_7 = arith.constant 5.000000e-01 : f32
    %20 = vector.broadcast %cst_7 : f32 to vector<8x384xf32>
    %21 = arith.mulf %20, %19 : vector<8x384xf32>
    %cst_8 = arith.constant 5.000000e-01 : f32
    %22 = vector.broadcast %cst_8 : f32 to vector<8x384xf32>
    %23 = arith.addf %21, %22 : vector<8x384xf32>
    %24 = arith.mulf %16, %23 : vector<8x384xf32>
    %c0_9 = arith.constant 0 : index
    %c0_10 = arith.constant 0 : index
    %c0_11 = arith.constant 0 : index
    %25 = vector.load %arg4[%c0_9, %c0_10, %c0_11] : memref<2x8x384xf32, #tpu.memory_space<vmem>>, vector<1x8x384xf32>
    %26 = vector.shape_cast %25 : vector<1x8x384xf32> to vector<8x384xf32>
    %27 = vector.shape_cast %24 : vector<8x384xf32> to vector<1x8x384xf32>
    tpu.vector_store %arg4[%c0_9, %c0_10, %c0_11], %27 {strides = array<i32>} : memref<2x8x384xf32, #tpu.memory_space<vmem>>, vector<1x8x384xf32>,
    %c1 = arith.constant 1 : index
    %c0_12 = arith.constant 0 : index
    %c0_13 = arith.constant 0 : index
    %28 = vector.load %arg1[%c1, %c0_12, %c0_13] : memref<2x4x512xf32, #tpu.memory_space<vmem>>, vector<1x4x512xf32>
    %29 = vector.shape_cast %28 : vector<1x4x512xf32> to vector<4x512xf32>
    %30 = vector.extract_strided_slice %29 {offsets = [0, 0], sizes = [4, 384], strides = [1, 1]} : vector<4x512xf32> to vector<4x384xf32>
    %31 = vector.extract_strided_slice %29 {offsets = [0, 1], sizes = [4, 384], strides = [1, 1]} : vector<4x512xf32> to vector<4x384xf32>
    %32 = vector.extract_strided_slice %29 {offsets = [0, 2], sizes = [4, 384], strides = [1, 1]} : vector<4x512xf32> to vector<4x384xf32>
    %33 = vector.extract_strided_slice %29 {offsets = [0, 24], sizes = [4, 384], strides = [1, 1]} : vector<4x512xf32> to vector<4x384xf32>
    %34 = vector.extract_strided_slice %29 {offsets = [0, 25], sizes = [4, 384], strides = [1, 1]} : vector<4x512xf32> to vector<4x384xf32>
    %35 = vector.extract_strided_slice %29 {offsets = [0, 26], sizes = [4, 384], strides = [1, 1]} : vector<4x512xf32> to vector<4x384xf32>
    %36 = vector.extract_strided_slice %29 {offsets = [0, 48], sizes = [4, 384], strides = [1, 1]} : vector<4x512xf32> to vector<4x384xf32>
    %37 = vector.extract_strided_slice %29 {offsets = [0, 49], sizes = [4, 384], strides = [1, 1]} : vector<4x512xf32> to vector<4x384xf32>
    %38 = vector.extract_strided_slice %29 {offsets = [0, 50], sizes = [4, 384], strides = [1, 1]} : vector<4x512xf32> to vector<4x384xf32>
    %39 = tpu.concatenate %30, %31, %32, %33, %34, %35, %36, %37, %38 in 0 : vector<4x384xf32>, vector<4x384xf32>, vector<4x384xf32>, vector<4x384xf32>, vector<4x384xf32>, vector<4x384xf32>, vector<4x384xf32>, vector<4x384xf32>, vector<4x384xf32> -> vector<36x384xf32>
    %cst_14 = arith.constant dense<0.000000e+00> : vector<8x384xf32>
    %40 = tpu.matmul %0, %39, %cst_14 {dimension_numbers = #tpu.dot_dimension_numbers<[1], [0], [0], [1], [0, 0, 1, 1], [], []>} : vector<8x36xf32>, vector<36x384xf32>, vector<8x384xf32> -> vector<8x384xf32>
    %41 = vector.broadcast %1 : vector<8x1xf32> to vector<8x384xf32>
    %42 = arith.addf %40, %41 : vector<8x384xf32>
    %cst_15 = arith.constant 5.000000e-01 : f32
    %43 = vector.broadcast %cst_15 : f32 to vector<8x384xf32>
    %44 = arith.mulf %43, %42 : vector<8x384xf32>
    %45 = math.tanh %44 : vector<8x384xf32>
    %cst_16 = arith.constant 5.000000e-01 : f32
    %46 = vector.broadcast %cst_16 : f32 to vector<8x384xf32>
    %47 = arith.mulf %46, %45 : vector<8x384xf32>
    %cst_17 = arith.constant 5.000000e-01 : f32
    %48 = vector.broadcast %cst_17 : f32 to vector<8x384xf32>
    %49 = arith.addf %47, %48 : vector<8x384xf32>
    %50 = arith.mulf %42, %49 : vector<8x384xf32>
    %c1_18 = arith.constant 1 : index
    %c0_19 = arith.constant 0 : index
    %c0_20 = arith.constant 0 : index
    %51 = vector.load %arg4[%c1_18, %c0_19, %c0_20] : memref<2x8x384xf32, #tpu.memory_space<vmem>>, vector<1x8x384xf32>
    %52 = vector.shape_cast %51 : vector<1x8x384xf32> to vector<8x384xf32>
    %53 = vector.shape_cast %50 : vector<8x384xf32> to vector<1x8x384xf32>
    tpu.vector_store %arg4[%c1_18, %c0_19, %c0_20], %53 {strides = array<i32>} : memref<2x8x384xf32, #tpu.memory_space<vmem>>, vector<1x8x384xf32>,
    return
  }
  func.func @transform_0(%arg0: i32) -> (i32, i32, i32) {
    %c0_i32 = arith.constant 0 : i32
    %c0_i32_0 = arith.constant 0 : i32
    %c0_i32_1 = arith.constant 0 : i32
    return %arg0, %c0_i32, %c0_i32_0 : i32, i32, i32
  }
  func.func @transform_1(%arg0: i32) -> (i32, i32) {
    %c0_i32 = arith.constant 0 : i32
    %c0_i32_0 = arith.constant 0 : i32
    %c0_i32_1 = arith.constant 0 : i32
    return %c0_i32, %c0_i32_0 : i32, i32
  }
  func.func @transform_2(%arg0: i32) -> (i32, i32) {
    %c0_i32 = arith.constant 0 : i32
    %c0_i32_0 = arith.constant 0 : i32
    %c0_i32_1 = arith.constant 0 : i32
    return %c0_i32, %c0_i32_0 : i32, i32
  }
  func.func @transform_3(%arg0: i32) -> (i32, i32, i32) {
    %c0_i32 = arith.constant 0 : i32
    %c0_i32_0 = arith.constant 0 : i32
    %c0_i32_1 = arith.constant 0 : i32
    return %arg0, %c0_i32, %c0_i32_0 : i32, i32, i32
  }
}

</mosaic_0001>

<llo_original>
// kernel: tpu_custom_call.1
$region0: #{tpu_custom_call.1}
  #allocation0 [shape = 'u32[]', space=smem, size = 0x4, offset = 0x4, fixed_abs, tag = 'smem constant byte address 0x4 - core index']
  #allocation1 [shape = 'u32[144,128]{1,0:T(1,128)}', space=vmem, size = 0x12000, scoped, tag = 'internal scratch']
  %s0 = inlined_call_operand.hbm [shape: f32[2,4,512], index: 0, kind: input, shape index: {}]
  %s1 = inlined_call_operand.vmem [shape: f32[8,36], index: 1, kind: input, shape index: {}]
  %s2 = inlined_call_operand.vmem [shape: f32[8,1], index: 2, kind: input, shape index: {}]
  %s3 = inlined_call_operand.hbm [shape: f32[2,8,384], index: 3, kind: output, shape index: {}]
  %s4 = sld [smem:[#allocation0]]
  $region26: #{tpu_custom_call.1} parent=0
    _
  %s6 = ssub.s32 1, %s4
  %s7 = scalar_select 0, %s6, %s4
  $region1: #{tpu_custom_call.1} parent=0
    #allocation2 [shape = 'u8[16384]{0}', space=vmem, size = 0x4000, scoped, tag = 'input window, operand 0, single buffered']
    #allocation3 [shape = 's32[1]{0}', space=sflag, size = 0x4, scoped, tag = 'scoped memory for tpu_custom_call.1']
    #allocation4 [shape = 's32[1]{0}', space=sflag, size = 0x4, scoped, tag = 'scoped memory for tpu_custom_call.1']
    #allocation5 [shape = 'u8[24576]{0}', space=vmem, size = 0x6000, scoped, tag = 'output window, operand 0, single buffered']
    %8 = vsyncpa [#allocation3], 0
    %9 = vsyncpa [#allocation4], 0
    // Predicated region
    $region2: #{tpu_custom_call.1} parent=1 // pred_check
      _
    $region3: #{tpu_custom_call.1} parent=1 // pred_check_branch
      %11 = sbr.rel (0) target = $region5
    $region4: #{tpu_custom_call.1} parent=1 // pred_region
      %s13 = ssub.s32 512, 512
      %14 = vsyncadd [#allocation3], %s13
      %s15 = sshll.u32 [#allocation2], 4
      %s16 = int_to_ptr.vmem [resolvable:$true] %s15
      %21 = dma.hbm_to_vmem [thread:$0]  %s0, 512, %s16, [#allocation3], 256, 256, 16
    $region5: #{tpu_custom_call.1} parent=1 // pred_fallthru
      _
    // Predicated region
    $region6: #{tpu_custom_call.1} parent=1 // pred_check
      _
    $region7: #{tpu_custom_call.1} parent=1 // pred_check_branch
      %23 = sbr.rel (0) target = $region9
    $region8: #{tpu_custom_call.1} parent=1 // pred_region
      _
    $region9: #{tpu_custom_call.1} parent=1 // pred_fallthru
      _
    // Predicated region
    $region10: #{tpu_custom_call.1} parent=1 // pred_check
      _
    $region11: #{tpu_custom_call.1} parent=1 // pred_check_branch
      %25 = sbr.rel (0) target = $region13
    $region12: #{tpu_custom_call.1} parent=1 // pred_region
      _
    $region13: #{tpu_custom_call.1} parent=1 // pred_fallthru
      _
    // Predicated region
    $region14: #{tpu_custom_call.1} parent=1 // pred_check
      _
    $region15: #{tpu_custom_call.1} parent=1 // pred_check_branch
      %27 = sbr.rel (0) target = $region17
    $region16: #{tpu_custom_call.1} parent=1 // pred_region
      %28 = dma.done [#allocation3], 512
    $region17: #{tpu_custom_call.1} parent=1 // pred_fallthru
      _
    %v29 = vld [vmem:[%s1] sm:$0xff]
    %v30 = vld [vmem:[%s2] sm:$0xff]
    %v31 = vld [vmem:[#allocation2] sm:$0xff]
    %v32 = vld [vmem:[#allocation2 + $0x8] sm:$0xff]
    %v35 = vcombine.high %v31, %v31
    %v37 = vcombine.low %v31, %v31
    %v38 = vcombine.low %v32, %v32
    %39 = vrot.lane.b32.xlu0 %v37, 127
    %v40 = vpop.permute.xlu0 %39
    %41 = vrot.lane.b32.xlu0 %v31, 127
    %v42 = vpop.permute.xlu0 %41
    %43 = vrot.lane.b32.xlu0 %v38, 127
    %v44 = vpop.permute.xlu0 %43
    %45 = vrot.lane.b32.xlu0 %v32, 127
    %v46 = vpop.permute.xlu0 %45
    %vm47 = vcmask 1039360
    %v48 = vsel %vm47, %v40, %v42
    %v49 = vsel %vm47, %v42, %v44
    %v50 = vsel %vm47, %v44, %v46
    %v54 = vcombine.high %v32, %v32
    %55 = vrot.lane.b32.xlu0 %v31, 126
    %v56 = vpop.permute.xlu0 %55
    %57 = vrot.lane.b32.xlu0 %v35, 126
    %v58 = vpop.permute.xlu0 %57
    %59 = vrot.lane.b32.xlu0 %v32, 126
    %v60 = vpop.permute.xlu0 %59
    %61 = vrot.lane.b32.xlu0 %v54, 126
    %v62 = vpop.permute.xlu0 %61
    %vm63 = vcmask 1031168
    %v64 = vsel %vm63, %v56, %v58
    %v65 = vsel %vm63, %v58, %v60
    %v66 = vsel %vm63, %v60, %v62
    %70 = vrot.lane.b32.xlu0 %v37, 104
    %v71 = vpop.permute.xlu0 %70
    %72 = vrot.lane.b32.xlu0 %v31, 104
    %v73 = vpop.permute.xlu0 %72
    %74 = vrot.lane.b32.xlu0 %v38, 104
    %v75 = vpop.permute.xlu0 %74
    %76 = vrot.lane.b32.xlu0 %v32, 104
    %v77 = vpop.permute.xlu0 %76
    %vm78 = vcmask 850944
    %v79 = vsel %vm78, %v71, %v73
    %v80 = vsel %vm78, %v73, %v75
    %v81 = vsel %vm78, %v75, %v77
    %85 = vrot.lane.b32.xlu0 %v31, 103
    %v86 = vpop.permute.xlu0 %85
    %87 = vrot.lane.b32.xlu0 %v35, 103
    %v88 = vpop.permute.xlu0 %87
    %89 = vrot.lane.b32.xlu0 %v32, 103
    %v90 = vpop.permute.xlu0 %89
    %91 = vrot.lane.b32.xlu0 %v54, 103
    %v92 = vpop.permute.xlu0 %91
    %vm93 = vcmask 842752
    %v94 = vsel %vm93, %v86, %v88
    %v95 = vsel %vm93, %v88, %v90
    %v96 = vsel %vm93, %v90, %v92
    %100 = vrot.lane.b32.xlu0 %v37, 102
    %v101 = vpop.permute.xlu0 %100
    %102 = vrot.lane.b32.xlu0 %v31, 102
    %v103 = vpop.permute.xlu0 %102
    %104 = vrot.lane.b32.xlu0 %v38, 102
    %v105 = vpop.permute.xlu0 %104
    %106 = vrot.lane.b32.xlu0 %v32, 102
    %v107 = vpop.permute.xlu0 %106
    %vm108 = vcmask 834560
    %v109 = vsel %vm108, %v101, %v103
    %v110 = vsel %vm108, %v103, %v105
    %v111 = vsel %vm108, %v105, %v107
    %115 = vrot.lane.b32.xlu0 %v31, 80
    %v116 = vpop.permute.xlu0 %115
    %117 = vrot.lane.b32.xlu0 %v35, 80
    %v118 = vpop.permute.xlu0 %117
    %119 = vrot.lane.b32.xlu0 %v32, 80
    %v120 = vpop.permute.xlu0 %119
    %121 = vrot.lane.b32.xlu0 %v54, 80
    %v122 = vpop.permute.xlu0 %121
    %vm123 = vcmask 654336
    %v124 = vsel %vm123, %v116, %v118
    %v125 = vsel %vm123, %v118, %v120
    %v126 = vsel %vm123, %v120, %v122
    %130 = vrot.lane.b32.xlu0 %v37, 79
    %v131 = vpop.permute.xlu0 %130
    %132 = vrot.lane.b32.xlu0 %v31, 79
    %v133 = vpop.permute.xlu0 %132
    %134 = vrot.lane.b32.xlu0 %v38, 79
    %v135 = vpop.permute.xlu0 %134
    %136 = vrot.lane.b32.xlu0 %v32, 79
    %v137 = vpop.permute.xlu0 %136
    %vm138 = vcmask 646144
    %v139 = vsel %vm138, %v131, %v133
    %v140 = vsel %vm138, %v133, %v135
    %v141 = vsel %vm138, %v135, %v137
    %145 = vrot.lane.b32.xlu0 %v31, 78
    %v146 = vpop.permute.xlu0 %145
    %147 = vrot.lane.b32.xlu0 %v35, 78
    %v148 = vpop.permute.xlu0 %147
    %149 = vrot.lane.b32.xlu0 %v32, 78
    %v150 = vpop.permute.xlu0 %149
    %151 = vrot.lane.b32.xlu0 %v54, 78
    %v152 = vpop.permute.xlu0 %151
    %vm153 = vcmask 637952
    %v154 = vsel %vm153, %v146, %v148
    %v155 = vsel %vm153, %v148, %v150
    %v156 = vsel %vm153, %v150, %v152
    %vm157 = vcmask 1043456
    %v158 = vsel %vm157, %v31, %v48
    %v159 = vsel %vm157, %v35, %v49
    %v160 = vsel %vm157, %v32, %v50
    %v161 = vsel %vm157, %v64, %v79
    %v162 = vsel %vm157, %v65, %v80
    %v163 = vsel %vm157, %v66, %v81
    %v164 = vsel %vm157, %v94, %v109
    %v165 = vsel %vm157, %v95, %v110
    %v166 = vsel %vm157, %v96, %v111
    %v167 = vsel %vm157, %v124, %v139
    %v168 = vsel %vm157, %v125, %v140
    %v169 = vsel %vm157, %v126, %v141
    %171 = vset.pattern.permute.xlu0 0
    %172 = vperm.xlu0 %171, %v30
    %v173 = vpop.permute.xlu0 %172
    %vm175 = vcmask 293888
    %v177 = vsel %vm175, %v29, 0
    %v179 = vsel %vm157, %v154, 0
    %v181 = vsel %vm157, %v155, 0
    %v183 = vsel %vm157, %v156, 0
    %185 = vmatprep.subr.mxu0 %v159
    %186 = vmatpush1.msra.mxu0 %v158
    %187 = vmatprep.subr.mxu0 %v162
    %188 = vmatpush1.msra.mxu0 %v161
    %189 = vmatprep.subr.mxu0 %v165
    %190 = vmatpush1.msra.mxu0 %v164
    %191 = vmatprep.subr.mxu0 %v168
    %192 = vmatpush1.msra.mxu0 %v167
    %193 = vmatprep.subr.mxu0 %v181
    %194 = vmatpush1.msra.mxu0 %v179
    %195 = vmatprep.subr.mxu0 0.0
    %196 = vmatpush1.msra.mxu0 0.0
    %197 = vmatprep.subr.mxu0 0.0
    %198 = vmatpush1.msra.mxu0 0.0
    %199 = vmatprep.subr.mxu0 0.0
    %200 = vmatpush1.msra.mxu0 0.0
    %201 = vmatprep.subr.mxu0 0.0
    %202 = vmatpush1.msra.mxu0 0.0
    %203 = vmatprep.subr.mxu0 0.0
    %204 = vmatpush1.msra.mxu0 0.0
    %205 = vmatprep.subr.mxu0 0.0
    %206 = vmatpush1.msra.mxu0 0.0
    %207 = vmatprep.subr.mxu0 0.0
    %208 = vmatpush1.msra.mxu0 0.0
    %209 = vmatprep.subr.mxu0 0.0
    %210 = vmatpush1.msra.mxu0 0.0
    %211 = vmatprep.subr.mxu0 0.0
    %212 = vmatpush1.msra.mxu0 0.0
    %213 = vmatprep.subr.mxu0 0.0
    %214 = vmatpush1.msra.mxu0 0.0
    %215 = vmatprep.subr.mxu0 0.0
    %216 = vmatpush1.msra.mxu0 0.0
    %217 = vmatprep.subr.mxu0 0.0
    %218 = vmatpush1.msra.mxu0 0.0
    %219 = vmatprep.subr.mxu0 0.0
    %220 = vmatpush1.msra.mxu0 0.0
    %221 = vmatprep.subr.mxu0 0.0
    %222 = vmatpush1.msra.mxu0 0.0
    %223 = vmatprep.subr.mxu0 0.0
    %224 = vmatpush1.msra.mxu0 0.0
    %225 = vmatprep.subr.mxu0 0.0
    %226 = vmatpush1.msra.mxu0 0.0
    %227 = vmatprep.subr.mxu0 0.0
    %228 = vmatpush1.msra.mxu0 0.0
    %229 = vmatprep.subr.mxu0 0.0
    %230 = vmatpush1.msra.mxu0 0.0
    %231 = vmatprep.subr.mxu0 0.0
    %232 = vmatpush1.msra.mxu0 0.0
    %233 = vmatprep.subr.mxu0 0.0
    %234 = vmatpush1.msra.mxu0 0.0
    %235 = vmatprep.subr.mxu0 0.0
    %236 = vmatpush1.msra.mxu0 0.0
    %237 = vmatprep.subr.mxu0 0.0
    %238 = vmatpush1.msra.mxu0 0.0
    %239 = vmatprep.subr.mxu0 0.0
    %240 = vmatpush1.msra.mxu0 0.0
    %241 = vmatprep.subr.mxu0 0.0
    %242 = vmatpush1.msra.mxu0 0.0
    %243 = vmatprep.subr.mxu0 0.0
    %244 = vmatpush1.msra.mxu0 0.0
    %245 = vmatprep.subr.mxu0 0.0
    %246 = vmatpush1.msra.mxu0 0.0
    %247 = vmatprep.subr.mxu0 0.0
    %248 = vmatpush1.msra.mxu0 0.0
    %249 = vmatprep.mubr.f32.mxu0 0.0
    %250 = vmatmul.mubr.f32.gmra.mrb[0].mxu0 %v177
    %v251 = vpop.f32.mrb[0].mxu0
    %v252 = vadd.f32 %v173, %v251
    %v253 = vpop.f32.mrb[0].mxu0
    %v254 = vadd.f32 %v173, %v253
    %255 = vdwg.mxu0
    %256 = vmatprep.subr.mxu0 0.0
    %257 = vmatpush1.msra.mxu0 %v160
    %258 = vmatprep.subr.mxu0 0.0
    %259 = vmatpush1.msra.mxu0 %v163
    %260 = vmatprep.subr.mxu0 0.0
    %261 = vmatpush1.msra.mxu0 %v166
    %262 = vmatprep.subr.mxu0 0.0
    %263 = vmatpush1.msra.mxu0 %v169
    %264 = vmatprep.subr.mxu0 0.0
    %265 = vmatpush1.msra.mxu0 %v183
    %266 = vmatprep.subr.mxu0 0.0
    %267 = vmatpush1.msra.mxu0 0.0
    %268 = vmatprep.subr.mxu0 0.0
    %269 = vmatpush1.msra.mxu0 0.0
    %270 = vmatprep.subr.mxu0 0.0
    %271 = vmatpush1.msra.mxu0 0.0
    %272 = vmatprep.subr.mxu0 0.0
    %273 = vmatpush1.msra.mxu0 0.0
    %274 = vmatprep.subr.mxu0 0.0
    %275 = vmatpush1.msra.mxu0 0.0
    %276 = vmatprep.subr.mxu0 0.0
    %277 = vmatpush1.msra.mxu0 0.0
    %278 = vmatprep.subr.mxu0 0.0
    %279 = vmatpush1.msra.mxu0 0.0
    %280 = vmatprep.subr.mxu0 0.0
    %281 = vmatpush1.msra.mxu0 0.0
    %282 = vmatprep.subr.mxu0 0.0
    %283 = vmatpush1.msra.mxu0 0.0
    %284 = vmatprep.subr.mxu0 0.0
    %285 = vmatpush1.msra.mxu0 0.0
    %286 = vmatprep.subr.mxu0 0.0
    %287 = vmatpush1.msra.mxu0 0.0
    %288 = vmatprep.subr.mxu0 0.0
    %289 = vmatpush1.msra.mxu0 0.0
    %290 = vmatprep.subr.mxu0 0.0
    %291 = vmatpush1.msra.mxu0 0.0
    %292 = vmatprep.subr.mxu0 0.0
    %293 = vmatpush1.msra.mxu0 0.0
    %294 = vmatprep.subr.mxu0 0.0
    %295 = vmatpush1.msra.mxu0 0.0
    %296 = vmatprep.subr.mxu0 0.0
    %297 = vmatpush1.msra.mxu0 0.0
    %298 = vmatprep.subr.mxu0 0.0
    %299 = vmatpush1.msra.mxu0 0.0
    %300 = vmatprep.subr.mxu0 0.0
    %301 = vmatpush1.msra.mxu0 0.0
    %302 = vmatprep.subr.mxu0 0.0
    %303 = vmatpush1.msra.mxu0 0.0
    %304 = vmatprep.subr.mxu0 0.0
    %305 = vmatpush1.msra.mxu0 0.0
    %306 = vmatprep.subr.mxu0 0.0
    %307 = vmatpush1.msra.mxu0 0.0
    %308 = vmatprep.subr.mxu0 0.0
    %309 = vmatpush1.msra.mxu0 0.0
    %310 = vmatprep.subr.mxu0 0.0
    %311 = vmatpush1.msra.mxu0 0.0
    %312 = vmatprep.subr.mxu0 0.0
    %313 = vmatpush1.msra.mxu0 0.0
    %314 = vmatprep.subr.mxu0 0.0
    %315 = vmatpush1.msra.mxu0 0.0
    %316 = vmatprep.subr.mxu0 0.0
    %317 = vmatpush1.msra.mxu0 0.0
    %318 = vmatprep.subr.mxu0 0.0
    %319 = vmatpush1.msra.mxu0 0.0
    %320 = vmatprep.mubr.f32.mxu0 0.0
    %321 = vmatmul.mubr.f32.gmra.mrb[0].mxu0 %v177
    %v322 = vpop.f32.mrb[0].mxu0
    %v323 = vadd.f32 %v173, %v322
    %v324 = vpop.f32.mrb[0].mxu0
    %325 = vdwg.mxu0
    %v326 = vmul.f32 %v252, 0.5
    %v327 = vmul.f32 %v254, 0.5
    %v328 = vmul.f32 %v323, 0.5
    %v329 = vtanh.pop %v326
    %v330 = vtanh.pop %v327
    %v331 = vtanh.pop %v328
    %v332 = vmul.f32 %v329, 0.5
    %v333 = vmul.f32 %v330, 0.5
    %v334 = vmul.f32 %v331, 0.5
    %v335 = vadd.f32 %v332, 0.5
    %v336 = vadd.f32 %v333, 0.5
    %v337 = vadd.f32 %v334, 0.5
    %v338 = vmul.f32 %v252, %v335
    %v339 = vmul.f32 %v254, %v336
    %v340 = vmul.f32 %v323, %v337
    %341 = vst [vmem:[#allocation5] sm:$0xff] %v338
    %342 = vst [vmem:[#allocation5 + $0x8] sm:$0xff] %v339
    %343 = vst [vmem:[#allocation5 + $0x10] sm:$0xff] %v340
    %s344 = scalar_lea.vmem [#allocation2], 16
    %v345 = vld [vmem:[%s344] sm:$0xff]
    %v346 = vld [vmem:[%s344 + $0x8] sm:$0xff]
    %v349 = vcombine.high %v345, %v345
    %v351 = vcombine.low %v345, %v345
    %v352 = vcombine.low %v346, %v346
    %353 = vrot.lane.b32.xlu0 %v351, 127
    %v354 = vpop.permute.xlu0 %353
    %355 = vrot.lane.b32.xlu0 %v345, 127
    %v356 = vpop.permute.xlu0 %355
    %357 = vrot.lane.b32.xlu0 %v352, 127
    %v358 = vpop.permute.xlu0 %357
    %359 = vrot.lane.b32.xlu0 %v346, 127
    %v360 = vpop.permute.xlu0 %359
    %v361 = vsel %vm47, %v354, %v356
    %v362 = vsel %vm47, %v356, %v358
    %v363 = vsel %vm47, %v358, %v360
    %v367 = vcombine.high %v346, %v346
    %368 = vrot.lane.b32.xlu0 %v345, 126
    %v369 = vpop.permute.xlu0 %368
    %370 = vrot.lane.b32.xlu0 %v349, 126
    %v371 = vpop.permute.xlu0 %370
    %372 = vrot.lane.b32.xlu0 %v346, 126
    %v373 = vpop.permute.xlu0 %372
    %374 = vrot.lane.b32.xlu0 %v367, 126
    %v375 = vpop.permute.xlu0 %374
    %v376 = vsel %vm63, %v369, %v371
    %v377 = vsel %vm63, %v371, %v373
    %v378 = vsel %vm63, %v373, %v375
    %382 = vrot.lane.b32.xlu0 %v351, 104
    %v383 = vpop.permute.xlu0 %382
    %384 = vrot.lane.b32.xlu0 %v345, 104
    %v385 = vpop.permute.xlu0 %384
    %386 = vrot.lane.b32.xlu0 %v352, 104
    %v387 = vpop.permute.xlu0 %386
    %388 = vrot.lane.b32.xlu0 %v346, 104
    %v389 = vpop.permute.xlu0 %388
    %v390 = vsel %vm78, %v383, %v385
    %v391 = vsel %vm78, %v385, %v387
    %v392 = vsel %vm78, %v387, %v389
    %396 = vrot.lane.b32.xlu0 %v345, 103
    %v397 = vpop.permute.xlu0 %396
    %398 = vrot.lane.b32.xlu0 %v349, 103
    %v399 = vpop.permute.xlu0 %398
    %400 = vrot.lane.b32.xlu0 %v346, 103
    %v401 = vpop.permute.xlu0 %400
    %402 = vrot.lane.b32.xlu0 %v367, 103
    %v403 = vpop.permute.xlu0 %402
    %v404 = vsel %vm93, %v397, %v399
    %v405 = vsel %vm93, %v399, %v401
    %v406 = vsel %vm93, %v401, %v403
    %410 = vrot.lane.b32.xlu0 %v351, 102
    %v411 = vpop.permute.xlu0 %410
    %412 = vrot.lane.b32.xlu0 %v345, 102
    %v413 = vpop.permute.xlu0 %412
    %414 = vrot.lane.b32.xlu0 %v352, 102
    %v415 = vpop.permute.xlu0 %414
    %416 = vrot.lane.b32.xlu0 %v346, 102
    %v417 = vpop.permute.xlu0 %416
    %v418 = vsel %vm108, %v411, %v413
    %v419 = vsel %vm108, %v413, %v415
    %v420 = vsel %vm108, %v415, %v417
    %424 = vrot.lane.b32.xlu0 %v345, 80
    %v425 = vpop.permute.xlu0 %424
    %426 = vrot.lane.b32.xlu0 %v349, 80
    %v427 = vpop.permute.xlu0 %426
    %428 = vrot.lane.b32.xlu0 %v346, 80
    %v429 = vpop.permute.xlu0 %428
    %430 = vrot.lane.b32.xlu0 %v367, 80
    %v431 = vpop.permute.xlu0 %430
    %v432 = vsel %vm123, %v425, %v427
    %v433 = vsel %vm123, %v427, %v429
    %v434 = vsel %vm123, %v429, %v431
    %438 = vrot.lane.b32.xlu0 %v351, 79
    %v439 = vpop.permute.xlu0 %438
    %440 = vrot.lane.b32.xlu0 %v345, 79
    %v441 = vpop.permute.xlu0 %440
    %442 = vrot.lane.b32.xlu0 %v352, 79
    %v443 = vpop.permute.xlu0 %442
    %444 = vrot.lane.b32.xlu0 %v346, 79
    %v445 = vpop.permute.xlu0 %444
    %v446 = vsel %vm138, %v439, %v441
    %v447 = vsel %vm138, %v441, %v443
    %v448 = vsel %vm138, %v443, %v445
    %452 = vrot.lane.b32.xlu0 %v345, 78
    %v453 = vpop.permute.xlu0 %452
    %454 = vrot.lane.b32.xlu0 %v349, 78
    %v455 = vpop.permute.xlu0 %454
    %456 = vrot.lane.b32.xlu0 %v346, 78
    %v457 = vpop.permute.xlu0 %456
    %458 = vrot.lane.b32.xlu0 %v367, 78
    %v459 = vpop.permute.xlu0 %458
    %v460 = vsel %vm153, %v453, %v455
    %v461 = vsel %vm153, %v455, %v457
    %v462 = vsel %vm153, %v457, %v459
    %v463 = vsel %vm157, %v345, %v361
    %v464 = vsel %vm157, %v349, %v362
    %v465 = vsel %vm157, %v346, %v363
    %v466 = vsel %vm157, %v376, %v390
    %v467 = vsel %vm157, %v377, %v391
    %v468 = vsel %vm157, %v378, %v392
    %v469 = vsel %vm157, %v404, %v418
    %v470 = vsel %vm157, %v405, %v419
    %v471 = vsel %vm157, %v406, %v420
    %v472 = vsel %vm157, %v432, %v446
    %v473 = vsel %vm157, %v433, %v447
    %v474 = vsel %vm157, %v434, %v448
    %v475 = vsel %vm157, %v460, 0
    %v477 = vsel %vm157, %v461, 0
    %v479 = vsel %vm157, %v462, 0
    %481 = vmatprep.subr.mxu0 %v464
    %482 = vmatpush1.msra.mxu0 %v463
    %483 = vmatprep.subr.mxu0 %v467
    %484 = vmatpush1.msra.mxu0 %v466
    %485 = vmatprep.subr.mxu0 %v470
    %486 = vmatpush1.msra.mxu0 %v469
    %487 = vmatprep.subr.mxu0 %v473
    %488 = vmatpush1.msra.mxu0 %v472
    %489 = vmatprep.subr.mxu0 %v477
    %490 = vmatpush1.msra.mxu0 %v475
    %491 = vmatprep.subr.mxu0 0.0
    %492 = vmatpush1.msra.mxu0 0.0
    %493 = vmatprep.subr.mxu0 0.0
    %494 = vmatpush1.msra.mxu0 0.0
    %495 = vmatprep.subr.mxu0 0.0
    %496 = vmatpush1.msra.mxu0 0.0
    %497 = vmatprep.subr.mxu0 0.0
    %498 = vmatpush1.msra.mxu0 0.0
    %499 = vmatprep.subr.mxu0 0.0
    %500 = vmatpush1.msra.mxu0 0.0
    %501 = vmatprep.subr.mxu0 0.0
    %502 = vmatpush1.msra.mxu0 0.0
    %503 = vmatprep.subr.mxu0 0.0
    %504 = vmatpush1.msra.mxu0 0.0
    %505 = vmatprep.subr.mxu0 0.0
    %506 = vmatpush1.msra.mxu0 0.0
    %507 = vmatprep.subr.mxu0 0.0
    %508 = vmatpush1.msra.mxu0 0.0
    %509 = vmatprep.subr.mxu0 0.0
    %510 = vmatpush1.msra.mxu0 0.0
    %511 = vmatprep.subr.mxu0 0.0
    %512 = vmatpush1.msra.mxu0 0.0
    %513 = vmatprep.subr.mxu0 0.0
    %514 = vmatpush1.msra.mxu0 0.0
    %515 = vmatprep.subr.mxu0 0.0
    %516 = vmatpush1.msra.mxu0 0.0
    %517 = vmatprep.subr.mxu0 0.0
    %518 = vmatpush1.msra.mxu0 0.0
    %519 = vmatprep.subr.mxu0 0.0
    %520 = vmatpush1.msra.mxu0 0.0
    %521 = vmatprep.subr.mxu0 0.0
    %522 = vmatpush1.msra.mxu0 0.0
    %523 = vmatprep.subr.mxu0 0.0
    %524 = vmatpush1.msra.mxu0 0.0
    %525 = vmatprep.subr.mxu0 0.0
    %526 = vmatpush1.msra.mxu0 0.0
    %527 = vmatprep.subr.mxu0 0.0
    %528 = vmatpush1.msra.mxu0 0.0
    %529 = vmatprep.subr.mxu0 0.0
    %530 = vmatpush1.msra.mxu0 0.0
    %531 = vmatprep.subr.mxu0 0.0
    %532 = vmatpush1.msra.mxu0 0.0
    %533 = vmatprep.subr.mxu0 0.0
    %534 = vmatpush1.msra.mxu0 0.0
    %535 = vmatprep.subr.mxu0 0.0
    %536 = vmatpush1.msra.mxu0 0.0
    %537 = vmatprep.subr.mxu0 0.0
    %538 = vmatpush1.msra.mxu0 0.0
    %539 = vmatprep.subr.mxu0 0.0
    %540 = vmatpush1.msra.mxu0 0.0
    %541 = vmatprep.subr.mxu0 0.0
    %542 = vmatpush1.msra.mxu0 0.0
    %543 = vmatprep.subr.mxu0 0.0
    %544 = vmatpush1.msra.mxu0 0.0
    %545 = vmatprep.mubr.f32.mxu0 0.0
    %546 = vmatmul.mubr.f32.gmra.mrb[0].mxu0 %v177
    %v547 = vpop.f32.mrb[0].mxu0
    %v548 = vadd.f32 %v173, %v547
    %v549 = vpop.f32.mrb[0].mxu0
    %v550 = vadd.f32 %v173, %v549
    %551 = vdwg.mxu0
    %552 = vmatprep.subr.mxu0 0.0
    %553 = vmatpush1.msra.mxu0 %v465
    %554 = vmatprep.subr.mxu0 0.0
    %555 = vmatpush1.msra.mxu0 %v468
    %556 = vmatprep.subr.mxu0 0.0
    %557 = vmatpush1.msra.mxu0 %v471
    %558 = vmatprep.subr.mxu0 0.0
    %559 = vmatpush1.msra.mxu0 %v474
    %560 = vmatprep.subr.mxu0 0.0
    %561 = vmatpush1.msra.mxu0 %v479
    %562 = vmatprep.subr.mxu0 0.0
    %563 = vmatpush1.msra.mxu0 0.0
    %564 = vmatprep.subr.mxu0 0.0
    %565 = vmatpush1.msra.mxu0 0.0
    %566 = vmatprep.subr.mxu0 0.0
    %567 = vmatpush1.msra.mxu0 0.0
    %568 = vmatprep.subr.mxu0 0.0
    %569 = vmatpush1.msra.mxu0 0.0
    %570 = vmatprep.subr.mxu0 0.0
    %571 = vmatpush1.msra.mxu0 0.0
    %572 = vmatprep.subr.mxu0 0.0
    %573 = vmatpush1.msra.mxu0 0.0
    %574 = vmatprep.subr.mxu0 0.0
    %575 = vmatpush1.msra.mxu0 0.0
    %576 = vmatprep.subr.mxu0 0.0
    %577 = vmatpush1.msra.mxu0 0.0
    %578 = vmatprep.subr.mxu0 0.0
    %579 = vmatpush1.msra.mxu0 0.0
    %580 = vmatprep.subr.mxu0 0.0
    %581 = vmatpush1.msra.mxu0 0.0
    %582 = vmatprep.subr.mxu0 0.0
    %583 = vmatpush1.msra.mxu0 0.0
    %584 = vmatprep.subr.mxu0 0.0
    %585 = vmatpush1.msra.mxu0 0.0
    %586 = vmatprep.subr.mxu0 0.0
    %587 = vmatpush1.msra.mxu0 0.0
    %588 = vmatprep.subr.mxu0 0.0
    %589 = vmatpush1.msra.mxu0 0.0
    %590 = vmatprep.subr.mxu0 0.0
    %591 = vmatpush1.msra.mxu0 0.0
    %592 = vmatprep.subr.mxu0 0.0
    %593 = vmatpush1.msra.mxu0 0.0
    %594 = vmatprep.subr.mxu0 0.0
    %595 = vmatpush1.msra.mxu0 0.0
    %596 = vmatprep.subr.mxu0 0.0
    %597 = vmatpush1.msra.mxu0 0.0
    %598 = vmatprep.subr.mxu0 0.0
    %599 = vmatpush1.msra.mxu0 0.0
    %600 = vmatprep.subr.mxu0 0.0
    %601 = vmatpush1.msra.mxu0 0.0
    %602 = vmatprep.subr.mxu0 0.0
    %603 = vmatpush1.msra.mxu0 0.0
    %604 = vmatprep.subr.mxu0 0.0
    %605 = vmatpush1.msra.mxu0 0.0
    %606 = vmatprep.subr.mxu0 0.0
    %607 = vmatpush1.msra.mxu0 0.0
    %608 = vmatprep.subr.mxu0 0.0
    %609 = vmatpush1.msra.mxu0 0.0
    %610 = vmatprep.subr.mxu0 0.0
    %611 = vmatpush1.msra.mxu0 0.0
    %612 = vmatprep.subr.mxu0 0.0
    %613 = vmatpush1.msra.mxu0 0.0
    %614 = vmatprep.subr.mxu0 0.0
    %615 = vmatpush1.msra.mxu0 0.0
    %616 = vmatprep.mubr.f32.mxu0 0.0
    %617 = vmatmul.mubr.f32.gmra.mrb[0].mxu0 %v177
    %v618 = vpop.f32.mrb[0].mxu0
    %v619 = vadd.f32 %v173, %v618
    %v620 = vpop.f32.mrb[0].mxu0
    %621 = vdwg.mxu0
    %v622 = vmul.f32 %v548, 0.5
    %v623 = vmul.f32 %v550, 0.5
    %v624 = vmul.f32 %v619, 0.5
    %v625 = vtanh.pop %v622
    %v626 = vtanh.pop %v623
    %v627 = vtanh.pop %v624
    %v628 = vmul.f32 %v625, 0.5
    %v629 = vmul.f32 %v626, 0.5
    %v630 = vmul.f32 %v627, 0.5
    %v631 = vadd.f32 %v628, 0.5
    %v632 = vadd.f32 %v629, 0.5
    %v633 = vadd.f32 %v630, 0.5
    %v634 = vmul.f32 %v548, %v631
    %v635 = vmul.f32 %v550, %v632
    %v636 = vmul.f32 %v619, %v633
    %s637 = scalar_lea.vmem [#allocation5], 24
    %638 = vst [vmem:[%s637] sm:$0xff] %v634
    %639 = vst [vmem:[%s637 + $0x8] sm:$0xff] %v635
    %640 = vst [vmem:[%s637 + $0x10] sm:$0xff] %v636
    // Predicated region
    $region18: #{tpu_custom_call.1} parent=1 // pred_check
      _
    $region19: #{tpu_custom_call.1} parent=1 // pred_check_branch
      %642 = sbr.rel (0) target = $region21
    $region20: #{tpu_custom_call.1} parent=1 // pred_region
      %s644 = ssub.s32 768, 768
      %645 = vsyncadd [#allocation4], %s644
      %s646 = sshll.u32 [#allocation5], 4
      %s647 = int_to_ptr.vmem [resolvable:$true] %s646
      %652 = dma.vmem_to_hbm [thread:$0]  %s647, 768, %s3, [#allocation4], 384, 384, 24
    $region21: #{tpu_custom_call.1} parent=1 // pred_fallthru
      _
    // Predicated region
    $region22: #{tpu_custom_call.1} parent=1 // pred_check
      _
    $region23: #{tpu_custom_call.1} parent=1 // pred_check_branch
      %654 = sbr.rel (0) target = $region25
    $region24: #{tpu_custom_call.1} parent=1 // pred_region
      %655 = dma.done [#allocation4], 768
    $region25: #{tpu_custom_call.1} parent=1 // pred_fallthru
      _
    %656 = vsyncpa [#allocation3], 1
    %657 = vsyncpa [#allocation4], 1

</llo_original>
